<compile_context>
chip_gen: v7x
topology: tpu7x:2x2x1
jax: 0.10.0
libtpu: 0.0.40
codegen_flags: <defaults>
</compile_context>

<pallas_src>
import functools
import math

import jax
import jax.numpy as jnp
from jax import lax
from jax.experimental import pallas as pl
from jax.experimental.pallas import tpu as pltpu

BN_EPS = 1e-5
_SMALL_CIN = 8                           # <= this, do the 1x1 conv on the VPU
_TARGET_BLOCK_BYTES = 4 * 1024 * 1024    # ~4 MiB of (x + out) bytes per tile
_MAX_FUSED_UNROLL_N = 8                  # fused path statically unrolls over N


def _round_up(v, m):
    return -(-v // m) * m


def _vmem_limit_bytes():
    """Scoped-VMEM budget derived from the actual chip (fallback: v7x 64 MiB)."""
    try:
        cap = int(pltpu.get_tpu_info().vmem_capacity_bytes)
    except Exception:
        cap = 64 * 1024 * 1024
    return min((cap * 3) // 4, 100 * 1024 * 1024)


def _choose_tile(hw, cin, cout, vmem_limit):
    """Byte-aware spatial tile: ~_TARGET_BLOCK_BYTES of x+out bytes per block,
    capped so double-buffered (x + out) blocks stay well inside vmem_limit,
    then rebalanced across tiles to minimize padding waste."""
    hw128 = _round_up(hw, 128)
    bytes_per_lane = 4 * (cin + cout)
    budget_cap = max(128, (vmem_limit // 2) // (2 * bytes_per_lane))
    tile = min(_TARGET_BLOCK_BYTES // bytes_per_lane, budget_cap)
    tile = max(128, (tile // 128) * 128)
    tile = min(tile, hw128)
    num_tiles = -(-hw128 // tile)
    tile = _round_up(-(-hw128 // num_tiles), 128)
    return tile, num_tiles, tile * num_tiles


def _conv1x1(w, b, y, small_cin):
    """(Cout, tile) = W (Cout, Cin) @ y (Cin, tile) + b; VPU MACs for tiny Cin."""
    if small_cin:
        cin = y.shape[0]
        acc = w[:, 0:1] * y[0:1, :]
        for c in range(1, cin):
            acc = acc + w[:, c:c + 1] * y[c:c + 1, :]
        return acc + b
    return jnp.dot(w, y, preferred_element_type=jnp.float32) + b


# --------------------------- fused single-pass kernel ------------------------
def _fused_kernel(x_ref, gamma_ref, beta_ref, w_ref, b_ref, o_ref, *,
                  n, inv_m, small_cin):
    # x_ref: (N, Cin, HWp) resident in VMEM; o_ref: (N, Cout, HWp).
    cin = x_ref.shape[1]
    s = jnp.zeros((cin, 1), jnp.float32)
    q = jnp.zeros((cin, 1), jnp.float32)
    for i in range(n):                       # static unroll (n is small here)
        xi = x_ref[i]
        s = s + jnp.sum(xi, axis=1, keepdims=True)
        q = q + jnp.sum(xi * xi, axis=1, keepdims=True)
    mean = s * inv_m
    var = jnp.maximum(q * inv_m - mean * mean, 0.0)
    scale = gamma_ref[...] * lax.rsqrt(var + BN_EPS)
    shift = beta_ref[...] - mean * scale
    w = w_ref[...]
    b = b_ref[...]
    for i in range(n):
        y = jnp.maximum(x_ref[i] * scale + shift, 0.0)
        o_ref[i] = _conv1x1(w, b, y, small_cin)


# ----------------------------- tiled two-pass kernels ------------------------
def _bn_stats_kernel(x_ref, sum_ref, sq_ref):
    # x_ref: (Cin, tile); sum/sq_ref: (Cin, 1) per-image resident accumulators.
    @pl.when(pl.program_id(1) == 0)
    def _():
        sum_ref[...] = jnp.zeros_like(sum_ref)
        sq_ref[...] = jnp.zeros_like(sq_ref)

    x = x_ref[...]
    sum_ref[...] += jnp.sum(x, axis=1, keepdims=True)
    sq_ref[...] += jnp.sum(x * x, axis=1, keepdims=True)


def _bn_relu_conv_kernel(sum_ref, sq_ref, gamma_ref, beta_ref, w_ref, b_ref,
                         x_ref, o_ref, *, inv_m, small_cin):
    # Tiny (Cin,1) prologue folds BN into one per-channel scale/shift, then
    # y = relu(x*scale + shift); out = W @ y + b written lane-dense.
    mean = sum_ref[...] * inv_m
    var = jnp.maximum(sq_ref[...] * inv_m - mean * mean, 0.0)
    scale = gamma_ref[...] * lax.rsqrt(var + BN_EPS)
    shift = beta_ref[...] - mean * scale
    y = jnp.maximum(x_ref[...] * scale + shift, 0.0)
    o_ref[...] = _conv1x1(w_ref[...], b_ref[...], y, small_cin)


# ---------------------------------- wrapper ----------------------------------
def bn_residual_conv1(x_nchw, gamma, beta, conv_w, conv_b, *, force_tiled=False):
    """BatchNorm2d (batch stats, eps=1e-5) -> ReLU -> 1x1 Conv2d.

    x_nchw: (N, Cin, H, W); gamma/beta: (Cin,); conv_w: (Cout, Cin, 1, 1);
    conv_b: (Cout,).  Returns (N, Cout, H, W) float32.
    """
    n, cin, h, w = x_nchw.shape
    cout = conv_w.shape[0]
    hw = h * w
    m = n * hw
    inv_m = float(1.0 / m)           # true element count (padding excluded)
    small_cin = cin <= _SMALL_CIN
    vmem_limit = _vmem_limit_bytes()

    x3 = x_nchw.reshape(n, cin, hw).astype(jnp.float32)   # free view of NCHW
    g2 = gamma.reshape(cin, 1).astype(jnp.float32)
    be2 = beta.reshape(cin, 1).astype(jnp.float32)
    w2 = conv_w.reshape(cout, cin).astype(jnp.float32)
    b2 = conv_b.reshape(cout, 1).astype(jnp.float32)
    param_bytes = 4 * (cout * cin + cout + 4 * cin)

    # -------- Fused single-pass path: whole slab resident in VMEM --------
    hw128 = _round_up(hw, 128)
    slab_bytes = 4 * n * hw128 * (cin + cout)
    fused_ok = (not force_tiled
                and n <= _MAX_FUSED_UNROLL_N
                and 2 * slab_bytes + param_bytes <= (vmem_limit * 4) // 5)
    if fused_ok:
        if hw128 != hw:
            x3 = jnp.pad(x3, ((0, 0), (0, 0), (0, hw128 - hw)))
        full3 = lambda g: (0, 0, 0)
        par2 = lambda g: (0, 0)
        out3 = pl.pallas_call(
            functools.partial(_fused_kernel, n=n, inv_m=inv_m,
                              small_cin=small_cin),
            out_shape=jax.ShapeDtypeStruct((n, cout, hw128), jnp.float32),
            grid=(1,),
            in_specs=[
                pl.BlockSpec((n, cin, hw128), full3),   # x (resident)
                pl.BlockSpec((cin, 1), par2),           # gamma
                pl.BlockSpec((cin, 1), par2),           # beta
                pl.BlockSpec((cout, cin), par2),        # conv weight
                pl.BlockSpec((cout, 1), par2),          # conv bias
            ],
            out_specs=pl.BlockSpec((n, cout, hw128), full3),
            compiler_params=pltpu.CompilerParams(
                dimension_semantics=("arbitrary",),
                vmem_limit_bytes=vmem_limit,
            ),
        )(x3, g2, be2, w2, b2)
        if hw128 != hw:
            out3 = out3[:, :, :hw]
        return out3.reshape(n, cout, h, w)

    # ----------------------- Tiled two-pass path -------------------------
    tile, num_tiles, hw_pad = _choose_tile(hw, cin, cout, vmem_limit)
    if hw_pad != hw:
        # Zero padding contributes nothing to sum/sumsq; stats divide by the
        # true m and padded lanes are sliced off the output below.
        x3 = jnp.pad(x3, ((0, 0), (0, 0), (0, hw_pad - hw)))

    x_map = lambda i, t: (i, 0, t)
    try:   # 3-deep input buffering on the pure read-reduce pass (if supported)
        x_stats_spec = pl.BlockSpec((None, cin, tile), x_map,
                                    pipeline_mode=pl.Buffered(3))
    except Exception:
        x_stats_spec = pl.BlockSpec((None, cin, tile), x_map)
    acc_spec = pl.BlockSpec((None, cin, 1), lambda i, t: (i, 0, 0))

    # Pass 1: per-image partial sums / sums-of-squares. Image axis "parallel"
    # (v7x megacore streams x on both cores); tile axis carries the accumulator.
    psum, psq = pl.pallas_call(
        _bn_stats_kernel,
        out_shape=(jax.ShapeDtypeStruct((n, cin, 1), jnp.float32),
                   jax.ShapeDtypeStruct((n, cin, 1), jnp.float32)),
        grid=(n, num_tiles),
        in_specs=[x_stats_spec],
        out_specs=(acc_spec, acc_spec),
        compiler_params=pltpu.CompilerParams(
            dimension_semantics=("parallel", "arbitrary"),
            vmem_limit_bytes=vmem_limit,
        ),
    )(x3)
    sums = jnp.sum(psum, axis=0)     # (Cin, 1): finish tiny N-reduction in XLA
    sqs = jnp.sum(psq, axis=0)

    # Pass 2: one flat "parallel" grid over all (image, tile) pairs so the
    # megacore split never idles a core when N == 1 or N is odd.
    flat_x = lambda g: (g // num_tiles, 0, g % num_tiles)
    par2 = lambda g: (0, 0)
    out3 = pl.pallas_call(
        functools.partial(_bn_relu_conv_kernel, inv_m=inv_m,
                          small_cin=small_cin),
        out_shape=jax.ShapeDtypeStruct((n, cout, hw_pad), jnp.float32),
        grid=(n * num_tiles,),
        in_specs=[
            pl.BlockSpec((cin, 1), par2),          # sums
            pl.BlockSpec((cin, 1), par2),          # sums of squares
            pl.BlockSpec((cin, 1), par2),          # gamma
            pl.BlockSpec((cin, 1), par2),          # beta
            pl.BlockSpec((cout, cin), par2),       # conv weight
            pl.BlockSpec((cout, 1), par2),         # conv bias
            pl.BlockSpec((None, cin, tile), flat_x),
        ],
        out_specs=pl.BlockSpec((None, cout, tile), flat_x),
        compiler_params=pltpu.CompilerParams(
            dimension_semantics=("parallel",),
            vmem_limit_bytes=vmem_limit,
        ),
    )(sums, sqs, g2, be2, w2, b2, x3)

    if hw_pad != hw:
        out3 = out3[:, :, :hw]
    return out3.reshape(n, cout, h, w)


# --------------------------------- reference ---------------------------------
def _reference(x_nchw, gamma, beta, conv_w, conv_b):
    # Pure-JAX reference mirroring PyTorch training-mode BN -> ReLU -> 1x1 conv.
    mean = jnp.mean(x_nchw, axis=(0, 2, 3), keepdims=True)
    var = jnp.mean((x_nchw - mean) ** 2, axis=(0, 2, 3), keepdims=True)
    y = (x_nchw - mean) * lax.rsqrt(var + BN_EPS)
    y = y * gamma.reshape(1, -1, 1, 1) + beta.reshape(1, -1, 1, 1)
    y = jnp.maximum(y, 0.0)
    out = jnp.einsum("nchw,oc->nohw", y,
                     conv_w.reshape(conv_w.shape[0], conv_w.shape[1]))
    return out + conv_b.reshape(1, -1, 1, 1)


if __name__ == "__main__":
    key = jax.random.PRNGKey(0)
    k_x, k_w, k_b, k_x2, k_w2, k_b2, k_g2, k_be2 = jax.random.split(key, 8)

    # --- Case 1 (module demo shape): fused single-pass path, small-Cin VPU conv.
    N, Cin, H, W, Cout = 2, 4, 16, 16, 8
    x = jax.random.normal(k_x, (N, Cin, H, W), dtype=jnp.float32)
    gamma = jnp.ones((Cin,), dtype=jnp.float32)          # PyTorch BN defaults
    beta = jnp.zeros((Cin,), dtype=jnp.float32)
    bound = 1.0 / math.sqrt(Cin * 1 * 1)                 # Conv2d default init
    conv_w = jax.random.uniform(k_w, (Cout, Cin, 1, 1), jnp.float32,
                                -bound, bound)
    conv_b = jax.random.uniform(k_b, (Cout,), jnp.float32, -bound, bound)

    out = jax.block_until_ready(bn_residual_conv1(x, gamma, beta, conv_w, conv_b))
    ref = _reference(x, gamma, beta, conv_w, conv_b)
    assert out.shape == (N, Cout, H, W)
    assert jnp.allclose(out, ref, atol=1e-4, rtol=1e-4), "fused path mismatch"

    # --- Case 2: force the tiled two-pass path; odd N, HW not a multiple of
    #     128 (exercises padding + stat masking), Cin > 8 (MXU conv path).
    N2, Cin2, H2, W2, Cout2 = 3, 16, 10, 10, 8
    x2 = jax.random.normal(k_x2, (N2, Cin2, H2, W2), dtype=jnp.float32)
    gamma2 = jax.random.uniform(k_g2, (Cin2,), jnp.float32, 0.5, 1.5)
    beta2 = 0.1 * jax.random.normal(k_be2, (Cin2,), dtype=jnp.float32)
    bound2 = 1.0 / math.sqrt(Cin2 * 1 * 1)
    conv_w2 = jax.random.uniform(k_w2, (Cout2, Cin2, 1, 1), jnp.float32,
                                 -bound2, bound2)
    conv_b2 = jax.random.uniform(k_b2, (Cout2,), jnp.float32, -bound2, bound2)

    out2 = jax.block_until_ready(
        bn_residual_conv1(x2, gamma2, beta2, conv_w2, conv_b2, force_tiled=True))
    ref2 = _reference(x2, gamma2, beta2, conv_w2, conv_b2)
    assert out2.shape == (N2, Cout2, H2, W2)
    assert jnp.allclose(out2, ref2, atol=1e-4, rtol=1e-4), "tiled path mismatch"

    print("KERNEL_OK")
</pallas_src>

<mosaic_0001>
module attributes {stable_mosaic.version = 11 : i64} {
  func.func @_fused_kernel(%arg0: i32, %arg1: memref<2x4x256xf32, #tpu.memory_space<vmem>>, %arg2: memref<4x1xf32, #tpu.memory_space<vmem>>, %arg3: memref<4x1xf32, #tpu.memory_space<vmem>>, %arg4: memref<8x4xf32, #tpu.memory_space<vmem>>, %arg5: memref<8x1xf32, #tpu.memory_space<vmem>>, %arg6: memref<2x8x256xf32, #tpu.memory_space<vmem>>) attributes {dimension_semantics = [#tpu.dimension_semantics<arbitrary>], iteration_bounds = array<i64: 1>, scalar_prefetch = 0 : i64, scratch_operands = 0 : i64, tpu.core_type = #tpu.core_type<tc>, window_params = [{pipeline_mode = #tpu.pipeline_mode<synchronous>, transform_indices = @transform_0, window_bounds = array<i64: 2, 4, 256>}, {pipeline_mode = #tpu.pipeline_mode<synchronous>, transform_indices = @transform_1, window_bounds = array<i64: 4, 1>}, {pipeline_mode = #tpu.pipeline_mode<synchronous>, transform_indices = @transform_2, window_bounds = array<i64: 4, 1>}, {pipeline_mode = #tpu.pipeline_mode<synchronous>, transform_indices = @transform_3, window_bounds = array<i64: 8, 4>}, {pipeline_mode = #tpu.pipeline_mode<synchronous>, transform_indices = @transform_4, window_bounds = array<i64: 8, 1>}, {pipeline_mode = #tpu.pipeline_mode<synchronous>, transform_indices = @transform_5, window_bounds = array<i64: 2, 8, 256>}]} {
    %cst = arith.constant 0.000000e+00 : f32
    %0 = vector.broadcast %cst : f32 to vector<4x1xf32>
    %cst_0 = arith.constant 0.000000e+00 : f32
    %1 = vector.broadcast %cst_0 : f32 to vector<4x1xf32>
    %c0 = arith.constant 0 : index
    %c0_1 = arith.constant 0 : index
    %c0_2 = arith.constant 0 : index
    %2 = vector.load %arg1[%c0, %c0_1, %c0_2] : memref<2x4x256xf32, #tpu.memory_space<vmem>>, vector<1x4x256xf32>
    %3 = vector.shape_cast %2 : vector<1x4x256xf32> to vector<4x256xf32>
    %cst_3 = arith.constant dense<0.000000e+00> : vector<4xf32>
    %4 = vector.multi_reduction <add>, %3, %cst_3 [1] : vector<4x256xf32> to vector<4xf32>
    %5 = vector.shape_cast %4 : vector<4xf32> to vector<4x1xf32>
    %6 = arith.addf %0, %5 : vector<4x1xf32>
    %7 = arith.mulf %3, %3 : vector<4x256xf32>
    %cst_4 = arith.constant dense<0.000000e+00> : vector<4xf32>
    %8 = vector.multi_reduction <add>, %7, %cst_4 [1] : vector<4x256xf32> to vector<4xf32>
    %9 = vector.shape_cast %8 : vector<4xf32> to vector<4x1xf32>
    %10 = arith.addf %1, %9 : vector<4x1xf32>
    %c1 = arith.constant 1 : index
    %c0_5 = arith.constant 0 : index
    %c0_6 = arith.constant 0 : index
    %11 = vector.load %arg1[%c1, %c0_5, %c0_6] : memref<2x4x256xf32, #tpu.memory_space<vmem>>, vector<1x4x256xf32>
    %12 = vector.shape_cast %11 : vector<1x4x256xf32> to vector<4x256xf32>
    %cst_7 = arith.constant dense<0.000000e+00> : vector<4xf32>
    %13 = vector.multi_reduction <add>, %12, %cst_7 [1] : vector<4x256xf32> to vector<4xf32>
    %14 = vector.shape_cast %13 : vector<4xf32> to vector<4x1xf32>
    %15 = arith.addf %6, %14 : vector<4x1xf32>
    %16 = arith.mulf %12, %12 : vector<4x256xf32>
    %cst_8 = arith.constant dense<0.000000e+00> : vector<4xf32>
    %17 = vector.multi_reduction <add>, %16, %cst_8 [1] : vector<4x256xf32> to vector<4xf32>
    %18 = vector.shape_cast %17 : vector<4xf32> to vector<4x1xf32>
    %19 = arith.addf %10, %18 : vector<4x1xf32>
    %cst_9 = arith.constant 0.001953125 : f32
    %20 = vector.broadcast %cst_9 : f32 to vector<4x1xf32>
    %21 = arith.mulf %15, %20 : vector<4x1xf32>
    %cst_10 = arith.constant 0.001953125 : f32
    %22 = vector.broadcast %cst_10 : f32 to vector<4x1xf32>
    %23 = arith.mulf %19, %22 : vector<4x1xf32>
    %24 = arith.mulf %21, %21 : vector<4x1xf32>
    %25 = arith.subf %23, %24 : vector<4x1xf32>
    %cst_11 = arith.constant 0.000000e+00 : f32
    %26 = vector.broadcast %cst_11 : f32 to vector<4x1xf32>
    %27 = arith.maximumf %25, %26 : vector<4x1xf32>
    %c0_12 = arith.constant 0 : index
    %c0_13 = arith.constant 0 : index
    %28 = vector.load %arg2[%c0_12, %c0_13] : memref<4x1xf32, #tpu.memory_space<vmem>>, vector<4x1xf32>
    %cst_14 = arith.constant 9.99999974E-6 : f32
    %29 = vector.broadcast %cst_14 : f32 to vector<4x1xf32>
    %30 = arith.addf %27, %29 : vector<4x1xf32>
    %31 = math.rsqrt %30 : vector<4x1xf32>
    %32 = arith.mulf %28, %31 : vector<4x1xf32>
    %c0_15 = arith.constant 0 : index
    %c0_16 = arith.constant 0 : index
    %33 = vector.load %arg3[%c0_15, %c0_16] : memref<4x1xf32, #tpu.memory_space<vmem>>, vector<4x1xf32>
    %34 = arith.mulf %21, %32 : vector<4x1xf32>
    %35 = arith.subf %33, %34 : vector<4x1xf32>
    %c0_17 = arith.constant 0 : index
    %c0_18 = arith.constant 0 : index
    %36 = vector.load %arg4[%c0_17, %c0_18] : memref<8x4xf32, #tpu.memory_space<vmem>>, vector<8x4xf32>
    %c0_19 = arith.constant 0 : index
    %c0_20 = arith.constant 0 : index
    %37 = vector.load %arg5[%c0_19, %c0_20] : memref<8x1xf32, #tpu.memory_space<vmem>>, vector<8x1xf32>
    %c0_21 = arith.constant 0 : index
    %c0_22 = arith.constant 0 : index
    %c0_23 = arith.constant 0 : index
    %38 = vector.load %arg1[%c0_21, %c0_22, %c0_23] : memref<2x4x256xf32, #tpu.memory_space<vmem>>, vector<1x4x256xf32>
    %39 = vector.shape_cast %38 : vector<1x4x256xf32> to vector<4x256xf32>
    %40 = vector.broadcast %32 : vector<4x1xf32> to vector<4x256xf32>
    %41 = arith.mulf %39, %40 : vector<4x256xf32>
    %42 = vector.broadcast %35 : vector<4x1xf32> to vector<4x256xf32>
    %43 = arith.addf %41, %42 : vector<4x256xf32>
    %cst_24 = arith.constant 0.000000e+00 : f32
    %44 = vector.broadcast %cst_24 : f32 to vector<4x256xf32>
    %45 = arith.maximumf %43, %44 : vector<4x256xf32>
    %46 = vector.extract_strided_slice %36 {offsets = [0, 0], sizes = [8, 1], strides = [1, 1]} : vector<8x4xf32> to vector<8x1xf32>
    %47 = vector.extract_strided_slice %45 {offsets = [0, 0], sizes = [1, 256], strides = [1, 1]} : vector<4x256xf32> to vector<1x256xf32>
    %48 = vector.broadcast %46 : vector<8x1xf32> to vector<8x256xf32>
    %49 = vector.broadcast %47 : vector<1x256xf32> to vector<8x256xf32>
    %50 = arith.mulf %48, %49 : vector<8x256xf32>
    %51 = vector.extract_strided_slice %36 {offsets = [0, 1], sizes = [8, 1], strides = [1, 1]} : vector<8x4xf32> to vector<8x1xf32>
    %52 = vector.extract_strided_slice %45 {offsets = [1, 0], sizes = [1, 256], strides = [1, 1]} : vector<4x256xf32> to vector<1x256xf32>
    %53 = vector.broadcast %51 : vector<8x1xf32> to vector<8x256xf32>
    %54 = vector.broadcast %52 : vector<1x256xf32> to vector<8x256xf32>
    %55 = arith.mulf %53, %54 : vector<8x256xf32>
    %56 = arith.addf %50, %55 : vector<8x256xf32>
    %57 = vector.extract_strided_slice %36 {offsets = [0, 2], sizes = [8, 1], strides = [1, 1]} : vector<8x4xf32> to vector<8x1xf32>
    %58 = vector.extract_strided_slice %45 {offsets = [2, 0], sizes = [1, 256], strides = [1, 1]} : vector<4x256xf32> to vector<1x256xf32>
    %59 = vector.broadcast %57 : vector<8x1xf32> to vector<8x256xf32>
    %60 = vector.broadcast %58 : vector<1x256xf32> to vector<8x256xf32>
    %61 = arith.mulf %59, %60 : vector<8x256xf32>
    %62 = arith.addf %56, %61 : vector<8x256xf32>
    %63 = vector.extract_strided_slice %36 {offsets = [0, 3], sizes = [8, 1], strides = [1, 1]} : vector<8x4xf32> to vector<8x1xf32>
    %64 = vector.extract_strided_slice %45 {offsets = [3, 0], sizes = [1, 256], strides = [1, 1]} : vector<4x256xf32> to vector<1x256xf32>
    %65 = vector.broadcast %63 : vector<8x1xf32> to vector<8x256xf32>
    %66 = vector.broadcast %64 : vector<1x256xf32> to vector<8x256xf32>
    %67 = arith.mulf %65, %66 : vector<8x256xf32>
    %68 = arith.addf %62, %67 : vector<8x256xf32>
    %69 = vector.broadcast %37 : vector<8x1xf32> to vector<8x256xf32>
    %70 = arith.addf %68, %69 : vector<8x256xf32>
    %c0_25 = arith.constant 0 : index
    %c0_26 = arith.constant 0 : index
    %c0_27 = arith.constant 0 : index
    %71 = vector.load %arg6[%c0_25, %c0_26, %c0_27] : memref<2x8x256xf32, #tpu.memory_space<vmem>>, vector<1x8x256xf32>
    %72 = vector.shape_cast %71 : vector<1x8x256xf32> to vector<8x256xf32>
    %73 = vector.shape_cast %70 : vector<8x256xf32> to vector<1x8x256xf32>
    tpu.vector_store %arg6[%c0_25, %c0_26, %c0_27], %73 {strides = array<i32>} : memref<2x8x256xf32, #tpu.memory_space<vmem>>, vector<1x8x256xf32>,
    %c1_28 = arith.constant 1 : index
    %c0_29 = arith.constant 0 : index
    %c0_30 = arith.constant 0 : index
    %74 = vector.load %arg1[%c1_28, %c0_29, %c0_30] : memref<2x4x256xf32, #tpu.memory_space<vmem>>, vector<1x4x256xf32>
    %75 = vector.shape_cast %74 : vector<1x4x256xf32> to vector<4x256xf32>
    %76 = vector.broadcast %32 : vector<4x1xf32> to vector<4x256xf32>
    %77 = arith.mulf %75, %76 : vector<4x256xf32>
    %78 = vector.broadcast %35 : vector<4x1xf32> to vector<4x256xf32>
    %79 = arith.addf %77, %78 : vector<4x256xf32>
    %cst_31 = arith.constant 0.000000e+00 : f32
    %80 = vector.broadcast %cst_31 : f32 to vector<4x256xf32>
    %81 = arith.maximumf %79, %80 : vector<4x256xf32>
    %82 = vector.extract_strided_slice %36 {offsets = [0, 0], sizes = [8, 1], strides = [1, 1]} : vector<8x4xf32> to vector<8x1xf32>
    %83 = vector.extract_strided_slice %81 {offsets = [0, 0], sizes = [1, 256], strides = [1, 1]} : vector<4x256xf32> to vector<1x256xf32>
    %84 = vector.broadcast %82 : vector<8x1xf32> to vector<8x256xf32>
    %85 = vector.broadcast %83 : vector<1x256xf32> to vector<8x256xf32>
    %86 = arith.mulf %84, %85 : vector<8x256xf32>
    %87 = vector.extract_strided_slice %36 {offsets = [0, 1], sizes = [8, 1], strides = [1, 1]} : vector<8x4xf32> to vector<8x1xf32>
    %88 = vector.extract_strided_slice %81 {offsets = [1, 0], sizes = [1, 256], strides = [1, 1]} : vector<4x256xf32> to vector<1x256xf32>
    %89 = vector.broadcast %87 : vector<8x1xf32> to vector<8x256xf32>
    %90 = vector.broadcast %88 : vector<1x256xf32> to vector<8x256xf32>
    %91 = arith.mulf %89, %90 : vector<8x256xf32>
    %92 = arith.addf %86, %91 : vector<8x256xf32>
    %93 = vector.extract_strided_slice %36 {offsets = [0, 2], sizes = [8, 1], strides = [1, 1]} : vector<8x4xf32> to vector<8x1xf32>
    %94 = vector.extract_strided_slice %81 {offsets = [2, 0], sizes = [1, 256], strides = [1, 1]} : vector<4x256xf32> to vector<1x256xf32>
    %95 = vector.broadcast %93 : vector<8x1xf32> to vector<8x256xf32>
    %96 = vector.broadcast %94 : vector<1x256xf32> to vector<8x256xf32>
    %97 = arith.mulf %95, %96 : vector<8x256xf32>
    %98 = arith.addf %92, %97 : vector<8x256xf32>
    %99 = vector.extract_strided_slice %36 {offsets = [0, 3], sizes = [8, 1], strides = [1, 1]} : vector<8x4xf32> to vector<8x1xf32>
    %100 = vector.extract_strided_slice %81 {offsets = [3, 0], sizes = [1, 256], strides = [1, 1]} : vector<4x256xf32> to vector<1x256xf32>
    %101 = vector.broadcast %99 : vector<8x1xf32> to vector<8x256xf32>
    %102 = vector.broadcast %100 : vector<1x256xf32> to vector<8x256xf32>
    %103 = arith.mulf %101, %102 : vector<8x256xf32>
    %104 = arith.addf %98, %103 : vector<8x256xf32>
    %105 = vector.broadcast %37 : vector<8x1xf32> to vector<8x256xf32>
    %106 = arith.addf %104, %105 : vector<8x256xf32>
    %c1_32 = arith.constant 1 : index
    %c0_33 = arith.constant 0 : index
    %c0_34 = arith.constant 0 : index
    %107 = vector.load %arg6[%c1_32, %c0_33, %c0_34] : memref<2x8x256xf32, #tpu.memory_space<vmem>>, vector<1x8x256xf32>
    %108 = vector.shape_cast %107 : vector<1x8x256xf32> to vector<8x256xf32>
    %109 = vector.shape_cast %106 : vector<8x256xf32> to vector<1x8x256xf32>
    tpu.vector_store %arg6[%c1_32, %c0_33, %c0_34], %109 {strides = array<i32>} : memref<2x8x256xf32, #tpu.memory_space<vmem>>, vector<1x8x256xf32>,
    return
  }
  func.func @transform_0(%arg0: i32) -> (i32, i32, i32) {
    %c0_i32 = arith.constant 0 : i32
    %c0_i32_0 = arith.constant 0 : i32
    %c0_i32_1 = arith.constant 0 : i32
    %c0_i32_2 = arith.constant 0 : i32
    return %c0_i32, %c0_i32_0, %c0_i32_1 : i32, i32, i32
  }
  func.func @transform_1(%arg0: i32) -> (i32, i32) {
    %c0_i32 = arith.constant 0 : i32
    %c0_i32_0 = arith.constant 0 : i32
    %c0_i32_1 = arith.constant 0 : i32
    return %c0_i32, %c0_i32_0 : i32, i32
  }
  func.func @transform_2(%arg0: i32) -> (i32, i32) {
    %c0_i32 = arith.constant 0 : i32
    %c0_i32_0 = arith.constant 0 : i32
    %c0_i32_1 = arith.constant 0 : i32
    return %c0_i32, %c0_i32_0 : i32, i32
  }
  func.func @transform_3(%arg0: i32) -> (i32, i32) {
    %c0_i32 = arith.constant 0 : i32
    %c0_i32_0 = arith.constant 0 : i32
    %c0_i32_1 = arith.constant 0 : i32
    return %c0_i32, %c0_i32_0 : i32, i32
  }
  func.func @transform_4(%arg0: i32) -> (i32, i32) {
    %c0_i32 = arith.constant 0 : i32
    %c0_i32_0 = arith.constant 0 : i32
    %c0_i32_1 = arith.constant 0 : i32
    return %c0_i32, %c0_i32_0 : i32, i32
  }
  func.func @transform_5(%arg0: i32) -> (i32, i32, i32) {
    %c0_i32 = arith.constant 0 : i32
    %c0_i32_0 = arith.constant 0 : i32
    %c0_i32_1 = arith.constant 0 : i32
    %c0_i32_2 = arith.constant 0 : i32
    return %c0_i32, %c0_i32_0, %c0_i32_1 : i32, i32, i32
  }
}

</mosaic_0001>

<llo_original>
// kernel: tpu_custom_call.1
$region0: #{tpu_custom_call.1}
  #allocation0 [shape = 'u32[]', space=smem, size = 0x4, offset = 0x4, fixed_abs, tag = 'smem constant byte address 0x4 - core index']
  #allocation1 [shape = 'u32[144,128]{1,0:T(1,128)}', space=vmem, size = 0x12000, scoped, tag = 'internal scratch']
  %s0 = inlined_call_operand.vmem [shape: f32[2,4,256], index: 0, kind: input, shape index: {}]
  %s1 = inlined_call_operand.vmem [shape: f32[4,1], index: 1, kind: input, shape index: {}]
  %s2 = inlined_call_operand.vmem [shape: f32[4,1], index: 2, kind: input, shape index: {}]
  %s3 = inlined_call_operand.vmem [shape: f32[8,4], index: 3, kind: input, shape index: {}]
  %s4 = inlined_call_operand.vmem [shape: f32[8,1], index: 4, kind: input, shape index: {}]
  %s5 = inlined_call_operand.hbm [shape: f32[2,8,256], index: 5, kind: output, shape index: {}]
  %s6 = sld [smem:[#allocation0]]
  $region30: #{tpu_custom_call.1} parent=0
    _
  %s8 = ssub.s32 1, %s6
  %s9 = scalar_select 0, %s8, %s6
  $region1: #{tpu_custom_call.1} parent=0
    #allocation2 [shape = 'u8[16384]{0}', space=vmem, size = 0x4000, scoped, tag = 'output window, operand 0, single buffered']
    #allocation3 [shape = 's32[1]{0}', space=sflag, size = 0x4, scoped, tag = 'scoped memory for tpu_custom_call.1']
    %10 = vsyncpa [#allocation3], 0
    // Predicated region
    $region2: #{tpu_custom_call.1} parent=1 // pred_check
      _
    $region3: #{tpu_custom_call.1} parent=1 // pred_check_branch
      %12 = sbr.rel (0) target = $region5
    $region4: #{tpu_custom_call.1} parent=1 // pred_region
      _
    $region5: #{tpu_custom_call.1} parent=1 // pred_fallthru
      _
    // Predicated region
    $region6: #{tpu_custom_call.1} parent=1 // pred_check
      _
    $region7: #{tpu_custom_call.1} parent=1 // pred_check_branch
      %14 = sbr.rel (0) target = $region9
    $region8: #{tpu_custom_call.1} parent=1 // pred_region
      _
    $region9: #{tpu_custom_call.1} parent=1 // pred_fallthru
      _
    // Predicated region
    $region10: #{tpu_custom_call.1} parent=1 // pred_check
      _
    $region11: #{tpu_custom_call.1} parent=1 // pred_check_branch
      %16 = sbr.rel (0) target = $region13
    $region12: #{tpu_custom_call.1} parent=1 // pred_region
      _
    $region13: #{tpu_custom_call.1} parent=1 // pred_fallthru
      _
    // Predicated region
    $region14: #{tpu_custom_call.1} parent=1 // pred_check
      _
    $region15: #{tpu_custom_call.1} parent=1 // pred_check_branch
      %18 = sbr.rel (0) target = $region17
    $region16: #{tpu_custom_call.1} parent=1 // pred_region
      _
    $region17: #{tpu_custom_call.1} parent=1 // pred_fallthru
      _
    // Predicated region
    $region18: #{tpu_custom_call.1} parent=1 // pred_check
      _
    $region19: #{tpu_custom_call.1} parent=1 // pred_check_branch
      %20 = sbr.rel (0) target = $region21
    $region20: #{tpu_custom_call.1} parent=1 // pred_region
      _
    $region21: #{tpu_custom_call.1} parent=1 // pred_fallthru
      _
    %v21 = vld [vmem:[%s0] sm:$0xff]
    %v23 = vcombine.high %v21, %v21
    %vm25 = vcmask 1043456
    %v26 = vsel %vm25, %v21, 0.0
    %v27 = vsel %vm25, %v23, 0.0
    %v28 = vadd.f32 %v26, %v27
    %29 = vadd.xlane.f32.xlu0 %v28
    %v30 = vpop.xlane.xlu0 %29
    %v31 = vadd.f32 %v30, 0.0
    %v32 = vmul.f32 %v21, %v21
    %v34 = vcombine.high %v32, %v32
    %v36 = vsel %vm25, %v32, 0.0
    %v37 = vsel %vm25, %v34, 0.0
    %v38 = vadd.f32 %v36, %v37
    %39 = vadd.xlane.f32.xlu0 %v38
    %v40 = vpop.xlane.xlu0 %39
    %v41 = vadd.f32 %v40, 0.0
    %s42 = scalar_lea.vmem %s0, 8
    %v43 = vld [vmem:[%s42] sm:$0xff]
    %v45 = vcombine.high %v43, %v43
    %v47 = vsel %vm25, %v43, 0.0
    %v48 = vsel %vm25, %v45, 0.0
    %v49 = vadd.f32 %v47, %v48
    %50 = vadd.xlane.f32.xlu0 %v49
    %v51 = vpop.xlane.xlu0 %50
    %v52 = vadd.f32 %v31, %v51
    %v53 = vmul.f32 %v43, %v43
    %v55 = vcombine.high %v53, %v53
    %v57 = vsel %vm25, %v53, 0.0
    %v58 = vsel %vm25, %v55, 0.0
    %v59 = vadd.f32 %v57, %v58
    %60 = vadd.xlane.f32.xlu0 %v59
    %v61 = vpop.xlane.xlu0 %60
    %v62 = vadd.f32 %v41, %v61
    %v63 = vmul.f32 %v52, 0.001953125
    %v64 = vmul.f32 %v62, 0.001953125
    %v65 = vmul.f32 %v63, %v63
    %v66 = vsub.f32 %v64, %v65
    %v67 = vmax.f32 %v66, 0.0
    %v68 = vld [vmem:[%s1] sm:$0xf]
    %v69 = vadd.f32 %v67, 1e-05
    %v70 = vrsqrt.pop %v69
    %v71 = vmul.f32 %v68, %v70
    %v72 = vld [vmem:[%s2] sm:$0xf]
    %v73 = vmul.f32 %v63, %v71
    %v74 = vsub.f32 %v72, %v73
    %v75 = vld [vmem:[%s3] sm:$0xff]
    %v76 = vld [vmem:[%s4] sm:$0xff]
    %78 = vset.pattern.permute.xlu0 0
    %79 = vperm.xlu0 %78, %v71
    %v80 = vpop.permute.xlu0 %79
    %v82 = vunpack.c.l.s4 839922192
    %v83 = vunpack.c.0.s8 %v82
    %v84 = vlaneseq
    %v85 = vshrl.u32 %v84, 7
    %v86 = vsub.s32 %v83, %v85
    %v87 = vrot.slane %v80, %v86
    %v89 = vmul.f32 %v21, %v87
    %91 = vset.pattern.permute.xlu0 0
    %92 = vperm.xlu0 %91, %v74
    %v93 = vpop.permute.xlu0 %92
    %v95 = vunpack.c.l.s4 839922192
    %v96 = vunpack.c.0.s8 %v95
    %v97 = vlaneseq
    %v98 = vshrl.u32 %v97, 7
    %v99 = vsub.s32 %v96, %v98
    %v100 = vrot.slane %v93, %v99
    %v102 = vadd.f32 %v89, %v100
    %v103 = vmax.f32 %v102, 0.0
    %105 = vset.pattern.permute.xlu0 0
    %106 = vperm.xlu0 %105, %v75
    %v107 = vpop.permute.xlu0 %106
    %v110 = vlaneseq
    %v111 = vshrl.u32 %v110, 7
    %v112 = vsub.s32 0, %v111
    %v113 = vrot.slane %v103, %v112
    %v114 = vlaneseq
    %v115 = vshrl.u32 %v114, 7
    %v116 = vsub.s32 4, %v115
    %v117 = vrot.slane %v103, %v116
    %v120 = vlaneseq
    %v121 = vshrl.u32 %v120, 7
    %v122 = vsub.s32 0, %v121
    %v123 = vrot.slane %v113, %v122
    %v124 = vlaneseq
    %v125 = vshrl.u32 %v124, 7
    %v126 = vsub.s32 0, %v125
    %v127 = vrot.slane %v117, %v126
    %v128 = vmul.f32 %v107, %v123
    %v129 = vmul.f32 %v107, %v127
    %130 = vset.pattern.permute.xlu0 1
    %131 = vperm.xlu0 %130, %v75
    %v132 = vpop.permute.xlu0 %131
    %v134 = vlaneseq
    %v135 = vshrl.u32 %v134, 7
    %v136 = vsub.s32 1, %v135
    %v137 = vrot.slane %v103, %v136
    %v138 = vlaneseq
    %v139 = vshrl.u32 %v138, 7
    %v140 = vsub.s32 5, %v139
    %v141 = vrot.slane %v103, %v140
    %v144 = vlaneseq
    %v145 = vshrl.u32 %v144, 7
    %v146 = vsub.s32 1, %v145
    %v147 = vrot.slane %v137, %v146
    %v148 = vlaneseq
    %v149 = vshrl.u32 %v148, 7
    %v150 = vsub.s32 1, %v149
    %v151 = vrot.slane %v141, %v150
    %v152 = vmul.f32 %v132, %v147
    %v153 = vmul.f32 %v132, %v151
    %v154 = vadd.f32 %v128, %v152
    %v155 = vadd.f32 %v129, %v153
    %156 = vset.pattern.permute.xlu0 2
    %157 = vperm.xlu0 %156, %v75
    %v158 = vpop.permute.xlu0 %157
    %v160 = vlaneseq
    %v161 = vshrl.u32 %v160, 7
    %v162 = vsub.s32 2, %v161
    %v163 = vrot.slane %v103, %v162
    %v164 = vlaneseq
    %v165 = vshrl.u32 %v164, 7
    %v166 = vsub.s32 6, %v165
    %v167 = vrot.slane %v103, %v166
    %v170 = vlaneseq
    %v171 = vshrl.u32 %v170, 7
    %v172 = vsub.s32 2, %v171
    %v173 = vrot.slane %v163, %v172
    %v174 = vlaneseq
    %v175 = vshrl.u32 %v174, 7
    %v176 = vsub.s32 2, %v175
    %v177 = vrot.slane %v167, %v176
    %v178 = vmul.f32 %v158, %v173
    %v179 = vmul.f32 %v158, %v177
    %v180 = vadd.f32 %v154, %v178
    %v181 = vadd.f32 %v155, %v179
    %182 = vset.pattern.permute.xlu0 3
    %183 = vperm.xlu0 %182, %v75
    %v184 = vpop.permute.xlu0 %183
    %v186 = vlaneseq
    %v187 = vshrl.u32 %v186, 7
    %v188 = vsub.s32 3, %v187
    %v189 = vrot.slane %v103, %v188
    %v190 = vlaneseq
    %v191 = vshrl.u32 %v190, 7
    %v192 = vsub.s32 7, %v191
    %v193 = vrot.slane %v103, %v192
    %v196 = vlaneseq
    %v197 = vshrl.u32 %v196, 7
    %v198 = vsub.s32 3, %v197
    %v199 = vrot.slane %v189, %v198
    %v200 = vlaneseq
    %v201 = vshrl.u32 %v200, 7
    %v202 = vsub.s32 3, %v201
    %v203 = vrot.slane %v193, %v202
    %v204 = vmul.f32 %v184, %v199
    %v205 = vmul.f32 %v184, %v203
    %v206 = vadd.f32 %v180, %v204
    %v207 = vadd.f32 %v181, %v205
    %209 = vset.pattern.permute.xlu0 0
    %210 = vperm.xlu0 %209, %v76
    %v211 = vpop.permute.xlu0 %210
    %v213 = vadd.f32 %v206, %v211
    %v214 = vadd.f32 %v207, %v211
    %215 = vst [vmem:[#allocation2] sm:$0xff] %v213
    %216 = vst [vmem:[#allocation2 + $0x8] sm:$0xff] %v214
    %v217 = vld [vmem:[%s42] sm:$0xff]
    %v218 = vmul.f32 %v217, %v87
    %v219 = vadd.f32 %v218, %v100
    %v220 = vmax.f32 %v219, 0.0
    %v222 = vlaneseq
    %v223 = vshrl.u32 %v222, 7
    %v224 = vsub.s32 0, %v223
    %v225 = vrot.slane %v220, %v224
    %v226 = vlaneseq
    %v227 = vshrl.u32 %v226, 7
    %v228 = vsub.s32 4, %v227
    %v229 = vrot.slane %v220, %v228
    %v232 = vlaneseq
    %v233 = vshrl.u32 %v232, 7
    %v234 = vsub.s32 0, %v233
    %v235 = vrot.slane %v225, %v234
    %v236 = vlaneseq
    %v237 = vshrl.u32 %v236, 7
    %v238 = vsub.s32 0, %v237
    %v239 = vrot.slane %v229, %v238
    %v240 = vmul.f32 %v107, %v235
    %v241 = vmul.f32 %v107, %v239
    %v242 = vlaneseq
    %v243 = vshrl.u32 %v242, 7
    %v244 = vsub.s32 1, %v243
    %v245 = vrot.slane %v220, %v244
    %v246 = vlaneseq
    %v247 = vshrl.u32 %v246, 7
    %v248 = vsub.s32 5, %v247
    %v249 = vrot.slane %v220, %v248
    %v252 = vlaneseq
    %v253 = vshrl.u32 %v252, 7
    %v254 = vsub.s32 1, %v253
    %v255 = vrot.slane %v245, %v254
    %v256 = vlaneseq
    %v257 = vshrl.u32 %v256, 7
    %v258 = vsub.s32 1, %v257
    %v259 = vrot.slane %v249, %v258
    %v260 = vmul.f32 %v132, %v255
    %v261 = vmul.f32 %v132, %v259
    %v262 = vadd.f32 %v240, %v260
    %v263 = vadd.f32 %v241, %v261
    %v264 = vlaneseq
    %v265 = vshrl.u32 %v264, 7
    %v266 = vsub.s32 2, %v265
    %v267 = vrot.slane %v220, %v266
    %v268 = vlaneseq
    %v269 = vshrl.u32 %v268, 7
    %v270 = vsub.s32 6, %v269
    %v271 = vrot.slane %v220, %v270
    %v274 = vlaneseq
    %v275 = vshrl.u32 %v274, 7
    %v276 = vsub.s32 2, %v275
    %v277 = vrot.slane %v267, %v276
    %v278 = vlaneseq
    %v279 = vshrl.u32 %v278, 7
    %v280 = vsub.s32 2, %v279
    %v281 = vrot.slane %v271, %v280
    %v282 = vmul.f32 %v158, %v277
    %v283 = vmul.f32 %v158, %v281
    %v284 = vadd.f32 %v262, %v282
    %v285 = vadd.f32 %v263, %v283
    %v286 = vlaneseq
    %v287 = vshrl.u32 %v286, 7
    %v288 = vsub.s32 3, %v287
    %v289 = vrot.slane %v220, %v288
    %v290 = vlaneseq
    %v291 = vshrl.u32 %v290, 7
    %v292 = vsub.s32 7, %v291
    %v293 = vrot.slane %v220, %v292
    %v296 = vlaneseq
    %v297 = vshrl.u32 %v296, 7
    %v298 = vsub.s32 3, %v297
    %v299 = vrot.slane %v289, %v298
    %v300 = vlaneseq
    %v301 = vshrl.u32 %v300, 7
    %v302 = vsub.s32 3, %v301
    %v303 = vrot.slane %v293, %v302
    %v304 = vmul.f32 %v184, %v299
    %v305 = vmul.f32 %v184, %v303
    %v306 = vadd.f32 %v284, %v304
    %v307 = vadd.f32 %v285, %v305
    %v308 = vadd.f32 %v306, %v211
    %v309 = vadd.f32 %v307, %v211
    %s310 = scalar_lea.vmem [#allocation2], 16
    %311 = vst [vmem:[%s310] sm:$0xff] %v308
    %312 = vst [vmem:[%s310 + $0x8] sm:$0xff] %v309
    // Predicated region
    $region22: #{tpu_custom_call.1} parent=1 // pred_check
      _
    $region23: #{tpu_custom_call.1} parent=1 // pred_check_branch
      %314 = sbr.rel (0) target = $region25
    $region24: #{tpu_custom_call.1} parent=1 // pred_region
      %s316 = ssub.s32 512, 512
      %317 = vsyncadd [#allocation3], %s316
      %s318 = sshll.u32 [#allocation2], 4
      %s319 = int_to_ptr.vmem [resolvable:$true] %s318
      %324 = dma.vmem_to_hbm [thread:$0]  %s319, 512, %s5, [#allocation3], 256, 256, 16
    $region25: #{tpu_custom_call.1} parent=1 // pred_fallthru
      _
    // Predicated region
    $region26: #{tpu_custom_call.1} parent=1 // pred_check
      _
    $region27: #{tpu_custom_call.1} parent=1 // pred_check_branch
      %326 = sbr.rel (0) target = $region29
    $region28: #{tpu_custom_call.1} parent=1 // pred_region
      %327 = dma.done [#allocation3], 512
    $region29: #{tpu_custom_call.1} parent=1 // pred_fallthru
      _
    %328 = vsyncpa [#allocation3], 1

</llo_original>
